<compile_context>
chip_gen: v7x
topology: tpu7x:2x2x1
jax: 0.10.0
libtpu: 0.0.40
codegen_flags: <defaults>
</compile_context>

<pallas_src>
import functools

import jax
import jax.numpy as jnp
from jax.experimental import pallas as pl
from jax.experimental.pallas import tpu as pltpu


def _round_up(n, m):
    return ((n + m - 1) // m) * m


def fused_ensemble_kernel(x_ref, spec_ref, w1x_ref, w1s_ref, b1_ref, w2_ref, b2_ref, out_ref):
    # Time pooling fused in-kernel (XLU reduction over the lane axis).  Dropout is identity at inference.
    pooled = jnp.mean(x_ref[...], axis=-1)                                # (Bt, C) f32
    # Hidden layer of all M sub-models in one pass (split matmul == concat([pool, spec]) @ W1).
    z = (jnp.dot(pooled.astype(jnp.bfloat16), w1x_ref[...],
                 preferred_element_type=jnp.float32)
         + jnp.dot(spec_ref[...].astype(jnp.bfloat16), w1s_ref[...],
                   preferred_element_type=jnp.float32)
         + b1_ref[...])
    z = jnp.maximum(z, 0.0)                                               # ReLU
    # Output heads + ensemble mean fused: w2 rows are the per-model heads, pre-scaled by 1/M.
    out_ref[...] = (jnp.dot(z.astype(jnp.bfloat16), w2_ref[...],
                            preferred_element_type=jnp.float32)
                    + b2_ref[...])


def prepare_fused_params(params):
    """One-time repack of the per-model weights into fused, padded, bf16 matrices.

    Call once at parameter-load time and reuse the result for every forward call
    (the review flagged per-call re-packing as pure wrapper overhead).
    Column / row index m*H + h of the fused matrices belongs to (model m, hidden unit h).
    """
    w1x, w1s, b1, w2, b2 = (params["w1x"], params["w1s"], params["b1"],
                            params["w2"], params["b2"])
    M, C, H = w1x.shape
    S = w1s.shape[1]
    K = w2.shape[2]
    MH = M * H
    MHp = _round_up(MH, 128)   # lane-dense hidden width
    Kp = _round_up(K, 128)     # lane-dense output width

    w1x_f = jnp.transpose(w1x, (1, 0, 2)).reshape(C, MH)                  # (C, M*H)
    w1s_f = jnp.transpose(w1s, (1, 0, 2)).reshape(S, MH)                  # (S, M*H)
    b1_f = jnp.transpose(b1, (1, 0, 2)).reshape(1, MH)                    # (1, M*H)
    w2_f = (w2 / float(M)).reshape(MH, K)                                 # (M*H, K), 1/M folded in
    b2_f = jnp.mean(b2, axis=0)                                           # (1, K)

    def pad(a, rows, cols):
        return jnp.pad(a, ((0, rows - a.shape[0]), (0, cols - a.shape[1])))

    # Padded hidden units have zero weights & bias -> ReLU(0)=0 -> contribute nothing downstream.
    return {
        "w1x": pad(w1x_f, C, MHp).astype(jnp.bfloat16),
        "w1s": pad(w1s_f, S, MHp).astype(jnp.bfloat16),
        "b1":  pad(b1_f, 1, MHp).astype(jnp.float32),
        "w2":  pad(w2_f, MHp, Kp).astype(jnp.bfloat16),
        "b2":  pad(b2_f, 1, Kp).astype(jnp.float32),
    }


@functools.partial(jax.jit, static_argnames=("num_classes", "batch_tile"))
def diverse_ensemble_forward(x, spec, fused, *, num_classes, batch_tile=256):
    """x: (B, C, T) f32, spec: (B, S) f32, fused: output of prepare_fused_params."""
    B, C, T = x.shape
    S = spec.shape[1]
    MHp, Kp = fused["w2"].shape

    # Batch tiling: one tile for small B, 256-row tiles (parallel -> megacore / v7x 2 TCs) otherwise.
    Bt = min(batch_tile, _round_up(B, 8))
    Bp = _round_up(B, Bt)

    x_p = jnp.pad(x, ((0, Bp - B), (0, 0), (0, 0)))
    spec_p = jnp.pad(spec, ((0, Bp - B), (0, 0)))

    out_p = pl.pallas_call(
        fused_ensemble_kernel,
        out_shape=jax.ShapeDtypeStruct((Bp, Kp), jnp.float32),
        grid=(Bp // Bt,),
        in_specs=[
            pl.BlockSpec((Bt, C, T), lambda i: (i, 0, 0)),   # raw x tile (pool fused in-kernel)
            pl.BlockSpec((Bt, S),    lambda i: (i, 0)),      # spectral features tile
            pl.BlockSpec((C, MHp),   lambda i: (0, 0)),      # fused W1 (x part)   — resident
            pl.BlockSpec((S, MHp),   lambda i: (0, 0)),      # fused W1 (spec part) — resident
            pl.BlockSpec((1, MHp),   lambda i: (0, 0)),      # fused b1
            pl.BlockSpec((MHp, Kp),  lambda i: (0, 0)),      # fused, 1/M-scaled W2 — resident
            pl.BlockSpec((1, Kp),    lambda i: (0, 0)),      # averaged b2
        ],
        out_specs=pl.BlockSpec((Bt, Kp), lambda i: (i, 0)),
        compiler_params=pltpu.CompilerParams(
            dimension_semantics=("parallel",)),
    )(x_p, spec_p, fused["w1x"], fused["w1s"], fused["b1"], fused["w2"], fused["b2"])

    return out_p[:B, :num_classes]


def reference_forward(x, spec, params):
    """Pure-JAX f32 reference of the same ensemble forward (explicit per-model loop + mean)."""
    h = jnp.mean(x, axis=-1)                                              # (B, C)
    M = params["w1x"].shape[0]
    outs = []
    for m in range(M):
        z = (jnp.dot(h, params["w1x"][m])
             + jnp.dot(spec, params["w1s"][m])
             + params["b1"][m, 0])
        z = jnp.maximum(z, 0.0)
        outs.append(jnp.dot(z, params["w2"][m]) + params["b2"][m, 0])
    return jnp.mean(jnp.stack(outs), axis=0)


def init_params(key, n_models, C, S, H, K):
    ks = jax.random.split(key, 5)
    scale1 = 1.0 / jnp.sqrt(C + S)
    scale2 = 1.0 / jnp.sqrt(H)
    return {
        "w1x": jax.random.normal(ks[0], (n_models, C, H), jnp.float32) * scale1,
        "w1s": jax.random.normal(ks[1], (n_models, S, H), jnp.float32) * scale1,
        "b1":  jax.random.normal(ks[2], (n_models, 1, H), jnp.float32) * 0.01,
        "w2":  jax.random.normal(ks[3], (n_models, H, K), jnp.float32) * scale2,
        "b2":  jax.random.normal(ks[4], (n_models, 1, K), jnp.float32) * 0.01,
    }


if __name__ == "__main__":
    # small shapes: batch=2, channels=4, time=16, spectral feats=8, hidden=32, classes=5, models=3
    B, C, T, S, H, K, M = 2, 4, 16, 8, 32, 5, 3

    key = jax.random.PRNGKey(0)
    kx, kspec, kparam = jax.random.split(key, 3)
    x = jax.random.normal(kx, (B, C, T), jnp.float32)
    spec = jax.random.normal(kspec, (B, S), jnp.float32)
    params = init_params(kparam, M, C, S, H, K)

    fused = prepare_fused_params(params)          # one-time weight repack, cached across calls

    out = diverse_ensemble_forward(x, spec, fused, num_classes=K)
    out = jax.block_until_ready(out)

    ref = reference_forward(x, spec, params)
    assert out.shape == (B, K)
    # bf16 matmul inputs (f32 accumulation) vs pure-f32 reference -> relaxed tolerance
    assert jnp.allclose(out, ref, atol=5e-2, rtol=5e-2), "kernel/reference mismatch"

    print("KERNEL_OK")
</pallas_src>

<mosaic_0001>
module attributes {stable_mosaic.version = 11 : i64} {
  func.func @fused_ensemble_kernel(%arg0: i32, %arg1: memref<8x4x16xf32, #tpu.memory_space<vmem>>, %arg2: memref<8x8xf32, #tpu.memory_space<vmem>>, %arg3: memref<4x128xbf16, #tpu.memory_space<vmem>>, %arg4: memref<8x128xbf16, #tpu.memory_space<vmem>>, %arg5: memref<1x128xf32, #tpu.memory_space<vmem>>, %arg6: memref<128x128xbf16, #tpu.memory_space<vmem>>, %arg7: memref<1x128xf32, #tpu.memory_space<vmem>>, %arg8: memref<8x128xf32, #tpu.memory_space<vmem>>) attributes {dimension_semantics = [#tpu.dimension_semantics<parallel>], iteration_bounds = array<i64: 1>, scalar_prefetch = 0 : i64, scratch_operands = 0 : i64, tpu.core_type = #tpu.core_type<tc>, window_params = [{transform_indices = @transform_0, window_bounds = array<i64: 8, 4, 16>}, {transform_indices = @transform_1, window_bounds = array<i64: 8, 8>}, {pipeline_mode = #tpu.pipeline_mode<synchronous>, transform_indices = @transform_2, window_bounds = array<i64: 4, 128>}, {pipeline_mode = #tpu.pipeline_mode<synchronous>, transform_indices = @transform_3, window_bounds = array<i64: 8, 128>}, {pipeline_mode = #tpu.pipeline_mode<synchronous>, transform_indices = @transform_4, window_bounds = array<i64: 1, 128>}, {pipeline_mode = #tpu.pipeline_mode<synchronous>, transform_indices = @transform_5, window_bounds = array<i64: 128, 128>}, {pipeline_mode = #tpu.pipeline_mode<synchronous>, transform_indices = @transform_6, window_bounds = array<i64: 1, 128>}, {transform_indices = @transform_7, window_bounds = array<i64: 8, 128>}]} {
    %c0 = arith.constant 0 : index
    %c0_0 = arith.constant 0 : index
    %c0_1 = arith.constant 0 : index
    %0 = vector.load %arg1[%c0, %c0_0, %c0_1] : memref<8x4x16xf32, #tpu.memory_space<vmem>>, vector<8x4x16xf32>
    %cst = arith.constant dense<0.000000e+00> : vector<8x4xf32>
    %1 = vector.multi_reduction <add>, %0, %cst [2] : vector<8x4x16xf32> to vector<8x4xf32>
    %cst_2 = arith.constant 1.600000e+01 : f32
    %2 = vector.broadcast %cst_2 : f32 to vector<8x4xf32>
    %3 = arith.divf %1, %2 : vector<8x4xf32>
    %4 = arith.truncf %3 : vector<8x4xf32> to vector<8x4xbf16>
    %c0_3 = arith.constant 0 : index
    %c0_4 = arith.constant 0 : index
    %5 = vector.load %arg3[%c0_3, %c0_4] : memref<4x128xbf16, #tpu.memory_space<vmem>>, vector<4x128xbf16>
    %cst_5 = arith.constant dense<0.000000e+00> : vector<8x128xf32>
    %6 = tpu.matmul %4, %5, %cst_5 {dimension_numbers = #tpu.dot_dimension_numbers<[1], [0], [0], [1], [0, 0, 1, 1], [], []>} : vector<8x4xbf16>, vector<4x128xbf16>, vector<8x128xf32> -> vector<8x128xf32>
    %c0_6 = arith.constant 0 : index
    %c0_7 = arith.constant 0 : index
    %7 = vector.load %arg2[%c0_6, %c0_7] : memref<8x8xf32, #tpu.memory_space<vmem>>, vector<8x8xf32>
    %8 = arith.truncf %7 : vector<8x8xf32> to vector<8x8xbf16>
    %c0_8 = arith.constant 0 : index
    %c0_9 = arith.constant 0 : index
    %9 = vector.load %arg4[%c0_8, %c0_9] : memref<8x128xbf16, #tpu.memory_space<vmem>>, vector<8x128xbf16>
    %cst_10 = arith.constant dense<0.000000e+00> : vector<8x128xf32>
    %10 = tpu.matmul %8, %9, %cst_10 {dimension_numbers = #tpu.dot_dimension_numbers<[1], [0], [0], [1], [0, 0, 1, 1], [], []>} : vector<8x8xbf16>, vector<8x128xbf16>, vector<8x128xf32> -> vector<8x128xf32>
    %11 = arith.addf %6, %10 : vector<8x128xf32>
    %c0_11 = arith.constant 0 : index
    %c0_12 = arith.constant 0 : index
    %12 = vector.load %arg5[%c0_11, %c0_12] : memref<1x128xf32, #tpu.memory_space<vmem>>, vector<1x128xf32>
    %13 = vector.broadcast %12 : vector<1x128xf32> to vector<8x128xf32>
    %14 = arith.addf %11, %13 : vector<8x128xf32>
    %cst_13 = arith.constant 0.000000e+00 : f32
    %15 = vector.broadcast %cst_13 : f32 to vector<8x128xf32>
    %16 = arith.maximumf %14, %15 : vector<8x128xf32>
    %17 = arith.truncf %16 : vector<8x128xf32> to vector<8x128xbf16>
    %c0_14 = arith.constant 0 : index
    %c0_15 = arith.constant 0 : index
    %18 = vector.load %arg6[%c0_14, %c0_15] : memref<128x128xbf16, #tpu.memory_space<vmem>>, vector<128x128xbf16>
    %cst_16 = arith.constant dense<0.000000e+00> : vector<8x128xf32>
    %19 = tpu.matmul %17, %18, %cst_16 {dimension_numbers = #tpu.dot_dimension_numbers<[1], [0], [0], [1], [0, 0, 1, 1], [], []>} : vector<8x128xbf16>, vector<128x128xbf16>, vector<8x128xf32> -> vector<8x128xf32>
    %c0_17 = arith.constant 0 : index
    %c0_18 = arith.constant 0 : index
    %20 = vector.load %arg7[%c0_17, %c0_18] : memref<1x128xf32, #tpu.memory_space<vmem>>, vector<1x128xf32>
    %21 = vector.broadcast %20 : vector<1x128xf32> to vector<8x128xf32>
    %22 = arith.addf %19, %21 : vector<8x128xf32>
    %c0_19 = arith.constant 0 : index
    %c0_20 = arith.constant 0 : index
    %23 = vector.load %arg8[%c0_19, %c0_20] : memref<8x128xf32, #tpu.memory_space<vmem>>, vector<8x128xf32>
    tpu.vector_store %arg8[%c0_19, %c0_20], %22 {strides = array<i32>} : memref<8x128xf32, #tpu.memory_space<vmem>>, vector<8x128xf32>,
    return
  }
  func.func @transform_0(%arg0: i32) -> (i32, i32, i32) {
    %c0_i32 = arith.constant 0 : i32
    %c0_i32_0 = arith.constant 0 : i32
    %c0_i32_1 = arith.constant 0 : i32
    return %arg0, %c0_i32, %c0_i32_0 : i32, i32, i32
  }
  func.func @transform_1(%arg0: i32) -> (i32, i32) {
    %c0_i32 = arith.constant 0 : i32
    %c0_i32_0 = arith.constant 0 : i32
    return %arg0, %c0_i32 : i32, i32
  }
  func.func @transform_2(%arg0: i32) -> (i32, i32) {
    %c0_i32 = arith.constant 0 : i32
    %c0_i32_0 = arith.constant 0 : i32
    %c0_i32_1 = arith.constant 0 : i32
    return %c0_i32, %c0_i32_0 : i32, i32
  }
  func.func @transform_3(%arg0: i32) -> (i32, i32) {
    %c0_i32 = arith.constant 0 : i32
    %c0_i32_0 = arith.constant 0 : i32
    %c0_i32_1 = arith.constant 0 : i32
    return %c0_i32, %c0_i32_0 : i32, i32
  }
  func.func @transform_4(%arg0: i32) -> (i32, i32) {
    %c0_i32 = arith.constant 0 : i32
    %c0_i32_0 = arith.constant 0 : i32
    %c0_i32_1 = arith.constant 0 : i32
    return %c0_i32, %c0_i32_0 : i32, i32
  }
  func.func @transform_5(%arg0: i32) -> (i32, i32) {
    %c0_i32 = arith.constant 0 : i32
    %c0_i32_0 = arith.constant 0 : i32
    %c0_i32_1 = arith.constant 0 : i32
    return %c0_i32, %c0_i32_0 : i32, i32
  }
  func.func @transform_6(%arg0: i32) -> (i32, i32) {
    %c0_i32 = arith.constant 0 : i32
    %c0_i32_0 = arith.constant 0 : i32
    %c0_i32_1 = arith.constant 0 : i32
    return %c0_i32, %c0_i32_0 : i32, i32
  }
  func.func @transform_7(%arg0: i32) -> (i32, i32) {
    %c0_i32 = arith.constant 0 : i32
    %c0_i32_0 = arith.constant 0 : i32
    return %arg0, %c0_i32 : i32, i32
  }
}

</mosaic_0001>

<llo_original>
// kernel: diverse_ensemble_forward.1
$region0: #{diverse_ensemble_forward.1}
  #allocation0 [shape = 'u32[]', space=smem, size = 0x4, offset = 0x4, fixed_abs, tag = 'smem constant byte address 0x4 - core index']
  #allocation1 [shape = 'u32[144,128]{1,0:T(1,128)}', space=vmem, size = 0x12000, scoped, tag = 'internal scratch']
  %s0 = inlined_call_operand.vmem [shape: f32[8,4,16], index: 0, kind: input, shape index: {}]
  %s1 = inlined_call_operand.vmem [shape: f32[8,8], index: 1, kind: input, shape index: {}]
  %s2 = inlined_call_operand.vmem [shape: bf16[4,128], index: 2, kind: input, shape index: {}]
  %s3 = inlined_call_operand.vmem [shape: bf16[8,128], index: 3, kind: input, shape index: {}]
  %s4 = inlined_call_operand.vmem [shape: f32[1,128], index: 4, kind: input, shape index: {}]
  %s5 = inlined_call_operand.vmem [shape: bf16[128,128], index: 5, kind: input, shape index: {}]
  %s6 = inlined_call_operand.vmem [shape: f32[1,128], index: 6, kind: input, shape index: {}]
  %s7 = inlined_call_operand.vmem [shape: f32[8,128], index: 7, kind: output, shape index: {}]
  %s8 = sld [smem:[#allocation0]]
  $region38: #{diverse_ensemble_forward.1} parent=0
    _
  %s10 = ssub.s32 1, %s8
  %s11 = scalar_select 0, %s10, %s8
  // Predicated region
  $region2: #{diverse_ensemble_forward.1} parent=0 // pred_check
    _
  $region3: #{diverse_ensemble_forward.1} parent=0 // pred_check_branch
    %13 = sbr.rel (0) target = $region5
  $region4: #{diverse_ensemble_forward.1} parent=0 // pred_region
    _
  $region5: #{diverse_ensemble_forward.1} parent=0 // pred_fallthru
    _
  // Predicated region
  $region6: #{diverse_ensemble_forward.1} parent=0 // pred_check
    _
  $region7: #{diverse_ensemble_forward.1} parent=0 // pred_check_branch
    %15 = sbr.rel (0) target = $region9
  $region8: #{diverse_ensemble_forward.1} parent=0 // pred_region
    _
  $region9: #{diverse_ensemble_forward.1} parent=0 // pred_fallthru
    _
  // Predicated region
  $region10: #{diverse_ensemble_forward.1} parent=0 // pred_check
    _
  $region11: #{diverse_ensemble_forward.1} parent=0 // pred_check_branch
    %17 = sbr.rel (0) target = $region13
  $region12: #{diverse_ensemble_forward.1} parent=0 // pred_region
    _
  $region13: #{diverse_ensemble_forward.1} parent=0 // pred_fallthru
    _
  // Predicated region
  $region14: #{diverse_ensemble_forward.1} parent=0 // pred_check
    _
  $region15: #{diverse_ensemble_forward.1} parent=0 // pred_check_branch
    %19 = sbr.rel (0) target = $region17
  $region16: #{diverse_ensemble_forward.1} parent=0 // pred_region
    _
  $region17: #{diverse_ensemble_forward.1} parent=0 // pred_fallthru
    _
  // Predicated region
  $region18: #{diverse_ensemble_forward.1} parent=0 // pred_check
    _
  $region19: #{diverse_ensemble_forward.1} parent=0 // pred_check_branch
    %21 = sbr.rel (0) target = $region21
  $region20: #{diverse_ensemble_forward.1} parent=0 // pred_region
    _
  $region21: #{diverse_ensemble_forward.1} parent=0 // pred_fallthru
    _
  // Predicated region
  $region22: #{diverse_ensemble_forward.1} parent=0 // pred_check
    _
  $region23: #{diverse_ensemble_forward.1} parent=0 // pred_check_branch
    %23 = sbr.rel (0) target = $region25
  $region24: #{diverse_ensemble_forward.1} parent=0 // pred_region
    _
  $region25: #{diverse_ensemble_forward.1} parent=0 // pred_fallthru
    _
  // Predicated region
  $region26: #{diverse_ensemble_forward.1} parent=0 // pred_check
    _
  $region27: #{diverse_ensemble_forward.1} parent=0 // pred_check_branch
    %25 = sbr.rel (0) target = $region29
  $region28: #{diverse_ensemble_forward.1} parent=0 // pred_region
    _
  $region29: #{diverse_ensemble_forward.1} parent=0 // pred_fallthru
    _
  %v27 = vld [vmem:[%s0] sm:$0xf]
  %v28 = vld [vmem:[%s0 + $0x4] sm:$0xf]
  %v29 = vld [vmem:[%s0 + $0x8] sm:$0xf]
  %v30 = vld [vmem:[%s0 + $0xc] sm:$0xf]
  %v31 = vld [vmem:[%s0 + $0x10] sm:$0xf]
  %v32 = vld [vmem:[%s0 + $0x14] sm:$0xf]
  %v33 = vld [vmem:[%s0 + $0x18] sm:$0xf]
  %v34 = vld [vmem:[%s0 + $0x1c] sm:$0xf]
  %vm35 = vcmask 125952
  %v36 = vsel %vm35, %v27, 0.0
  %37 = vadd.xlane.f32.xlu0 %v36
  %v38 = vpop.xlane.xlu0 %37
  %v39 = vsel %vm35, %v28, 0.0
  %40 = vadd.xlane.f32.xlu0 %v39
  %v41 = vpop.xlane.xlu0 %40
  %v42 = vsel %vm35, %v29, 0.0
  %43 = vadd.xlane.f32.xlu0 %v42
  %v44 = vpop.xlane.xlu0 %43
  %v45 = vsel %vm35, %v30, 0.0
  %46 = vadd.xlane.f32.xlu0 %v45
  %v47 = vpop.xlane.xlu0 %46
  %v48 = vsel %vm35, %v31, 0.0
  %49 = vadd.xlane.f32.xlu0 %v48
  %v50 = vpop.xlane.xlu0 %49
  %v51 = vsel %vm35, %v32, 0.0
  %52 = vadd.xlane.f32.xlu0 %v51
  %v53 = vpop.xlane.xlu0 %52
  %v54 = vsel %vm35, %v33, 0.0
  %55 = vadd.xlane.f32.xlu0 %v54
  %v56 = vpop.xlane.xlu0 %55
  %v57 = vsel %vm35, %v34, 0.0
  %58 = vadd.xlane.f32.xlu0 %v57
  %v59 = vpop.xlane.xlu0 %58
  %v60 = vrcp.pop 16.0
  %v61 = vmul.f32 %v38, %v60
  %v62 = vmul.f32 %v41, %v60
  %v63 = vmul.f32 %v44, %v60
  %v64 = vmul.f32 %v47, %v60
  %v65 = vmul.f32 %v50, %v60
  %v66 = vmul.f32 %v53, %v60
  %v67 = vmul.f32 %v56, %v60
  %v68 = vmul.f32 %v59, %v60
  %v69 = vpack.c.bf16 %v61, %v61
  %v70 = vpack.c.bf16 %v62, %v62
  %v71 = vpack.c.bf16 %v63, %v63
  %v72 = vpack.c.bf16 %v64, %v64
  %v73 = vpack.c.bf16 %v65, %v65
  %v74 = vpack.c.bf16 %v66, %v66
  %v75 = vpack.c.bf16 %v67, %v67
  %v76 = vpack.c.bf16 %v68, %v68
  %v77 = vld [vmem:[%s2] sm:$0x3]
  %v78 = vld [vmem:[%s1] sm:$0xff]
  %v79 = vpack.c.bf16 %v78, %v78
  %v80 = vld [vmem:[%s3] sm:$0xf]
  %vm81 = vcmask 64512
  %v83 = vsel %vm81, %v79, 0
  %vm85 = vcmask 1043456
  %v87 = vsel %vm85, %v80, 0
  %89 = vmatprep.subr.bf16.mxu0 0
  %90 = vmatpush1.bf16.msra.mxu0 %v87
  %91 = vmatprep.subr.bf16.mxu0 0
  %92 = vmatpush1.bf16.msra.mxu0 0
  %93 = vmatprep.subr.bf16.mxu0 0
  %94 = vmatpush1.bf16.msra.mxu0 0
  %95 = vmatprep.subr.bf16.mxu0 0
  %96 = vmatpush1.bf16.msra.mxu0 0
  %97 = vmatprep.subr.bf16.mxu0 0
  %98 = vmatpush1.bf16.msra.mxu0 0
  %99 = vmatprep.subr.bf16.mxu0 0
  %100 = vmatpush1.bf16.msra.mxu0 0
  %101 = vmatprep.subr.bf16.mxu0 0
  %102 = vmatpush1.bf16.msra.mxu0 0
  %103 = vmatprep.subr.bf16.mxu0 0
  %104 = vmatpush1.bf16.msra.mxu0 0
  %105 = vmatprep.subr.bf16.mxu0 0
  %106 = vmatpush1.bf16.msra.mxu0 0
  %107 = vmatprep.subr.bf16.mxu0 0
  %108 = vmatpush1.bf16.msra.mxu0 0
  %109 = vmatprep.subr.bf16.mxu0 0
  %110 = vmatpush1.bf16.msra.mxu0 0
  %111 = vmatprep.subr.bf16.mxu0 0
  %112 = vmatpush1.bf16.msra.mxu0 0
  %113 = vmatprep.subr.bf16.mxu0 0
  %114 = vmatpush1.bf16.msra.mxu0 0
  %115 = vmatprep.subr.bf16.mxu0 0
  %116 = vmatpush1.bf16.msra.mxu0 0
  %117 = vmatprep.subr.bf16.mxu0 0
  %118 = vmatpush1.bf16.msra.mxu0 0
  %119 = vmatprep.subr.bf16.mxu0 0
  %120 = vmatpush1.bf16.msra.mxu0 0
  %121 = vmatprep.mubr.bf16.mxu0 0
  %122 = vmatmul.mubr.bf16.gmra.mrb[0].mxu0 %v83
  %v123 = vpop.f32.mrb[0].mxu0
  %v124 = vadd.f32 0.0, %v123
  %v125 = vpop.f32.mrb[0].mxu0
  %v126 = vpop.f32.mrb[0].mxu0
  %v127 = vpop.f32.mrb[0].mxu0
  %128 = vdwg.mxu0
  %v137 = vunpack.c.l.b16 %v69
  %v138 = vunpack.c.l.b16 %v70
  %v139 = vunpack.c.l.b16 %v71
  %v140 = vunpack.c.l.b16 %v72
  %v141 = vunpack.c.l.b16 %v73
  %v142 = vunpack.c.l.b16 %v74
  %v143 = vunpack.c.l.b16 %v75
  %v144 = vunpack.c.l.b16 %v76
  %v145 = vlaneseq
  %v146 = vand.u32 %v145, 127
  %v147 = vlaneseq
  %v148 = vshrl.u32 %v147, 7
  %v149 = vsub.s32 %v146, %v148
  %v150 = vrot.slane %v137, %v149
  %v151 = vlaneseq
  %v152 = vshrl.u32 %v151, 7
  %v153 = vsub.s32 %v146, %v152
  %v154 = vrot.slane %v138, %v153
  %v155 = vlaneseq
  %v156 = vshrl.u32 %v155, 7
  %v157 = vsub.s32 %v146, %v156
  %v158 = vrot.slane %v139, %v157
  %v159 = vlaneseq
  %v160 = vshrl.u32 %v159, 7
  %v161 = vsub.s32 %v146, %v160
  %v162 = vrot.slane %v140, %v161
  %v163 = vlaneseq
  %v164 = vshrl.u32 %v163, 7
  %v165 = vsub.s32 %v146, %v164
  %v166 = vrot.slane %v141, %v165
  %v167 = vlaneseq
  %v168 = vshrl.u32 %v167, 7
  %v169 = vsub.s32 %v146, %v168
  %v170 = vrot.slane %v142, %v169
  %v171 = vlaneseq
  %v172 = vshrl.u32 %v171, 7
  %v173 = vsub.s32 %v146, %v172
  %v174 = vrot.slane %v143, %v173
  %v175 = vlaneseq
  %v176 = vshrl.u32 %v175, 7
  %v177 = vsub.s32 %v146, %v176
  %v178 = vrot.slane %v144, %v177
  %vm179 = vcmask 1041409
  %v180 = vsel %vm179, %v154, %v150
  %vm181 = vcmask 1042434
  %v182 = vsel %vm181, %v158, %v180
  %vm183 = vcmask 1043459
  %v184 = vsel %vm183, %v162, %v182
  %vm185 = vcmask 1044484
  %v186 = vsel %vm185, %v166, %v184
  %vm187 = vcmask 1045509
  %v188 = vsel %vm187, %v170, %v186
  %vm189 = vcmask 1046534
  %v190 = vsel %vm189, %v174, %v188
  %vm191 = vcmask 1047559
  %v192 = vsel %vm191, %v178, %v190
  %v193 = vpack.c.b16 %v192, %v192
  %vm194 = vcmask 31744
  %v196 = vsel %vm194, %v193, 0
  %vm198 = vcmask 1041408
  %v200 = vsel %vm198, %v77, 0
  %202 = vmatprep.subr.bf16.mxu0 0
  %203 = vmatpush1.bf16.msra.mxu0 %v200
  %204 = vmatprep.subr.bf16.mxu0 0
  %205 = vmatpush1.bf16.msra.mxu0 0
  %206 = vmatprep.subr.bf16.mxu0 0
  %207 = vmatpush1.bf16.msra.mxu0 0
  %208 = vmatprep.subr.bf16.mxu0 0
  %209 = vmatpush1.bf16.msra.mxu0 0
  %210 = vmatprep.subr.bf16.mxu0 0
  %211 = vmatpush1.bf16.msra.mxu0 0
  %212 = vmatprep.subr.bf16.mxu0 0
  %213 = vmatpush1.bf16.msra.mxu0 0
  %214 = vmatprep.subr.bf16.mxu0 0
  %215 = vmatpush1.bf16.msra.mxu0 0
  %216 = vmatprep.subr.bf16.mxu0 0
  %217 = vmatpush1.bf16.msra.mxu0 0
  %218 = vmatprep.subr.bf16.mxu0 0
  %219 = vmatpush1.bf16.msra.mxu0 0
  %220 = vmatprep.subr.bf16.mxu0 0
  %221 = vmatpush1.bf16.msra.mxu0 0
  %222 = vmatprep.subr.bf16.mxu0 0
  %223 = vmatpush1.bf16.msra.mxu0 0
  %224 = vmatprep.subr.bf16.mxu0 0
  %225 = vmatpush1.bf16.msra.mxu0 0
  %226 = vmatprep.subr.bf16.mxu0 0
  %227 = vmatpush1.bf16.msra.mxu0 0
  %228 = vmatprep.subr.bf16.mxu0 0
  %229 = vmatpush1.bf16.msra.mxu0 0
  %230 = vmatprep.subr.bf16.mxu0 0
  %231 = vmatpush1.bf16.msra.mxu0 0
  %232 = vmatprep.subr.bf16.mxu0 0
  %233 = vmatpush1.bf16.msra.mxu0 0
  %234 = vmatprep.mubr.bf16.mxu0 0
  %235 = vmatmul.mubr.bf16.gmra.mrb[0].mxu0 %v196
  %v236 = vpop.f32.mrb[0].mxu0
  %v237 = vadd.f32 %v124, %v236
  %v238 = vpop.f32.mrb[0].mxu0
  %v239 = vpop.f32.mrb[0].mxu0
  %v240 = vpop.f32.mrb[0].mxu0
  %241 = vdwg.mxu0
  %v242 = vld [vmem:[%s4] sm:$0x1]
  %v244 = vlaneseq
  %v245 = vshrl.u32 %v244, 7
  %v246 = vsub.s32 0, %v245
  %v247 = vrot.slane %v242, %v246
  %v249 = vadd.f32 %v237, %v247
  %v250 = vmax.f32 %v249, 0.0
  %v251 = vpack.c.bf16 %v250, %v250
  %v252 = vld [vmem:[%s5] sm:$0xf]
  %v253 = vld [vmem:[%s5 + $0x4] sm:$0xf]
  %v254 = vld [vmem:[%s5 + $0x8] sm:$0xf]
  %v255 = vld [vmem:[%s5 + $0xc] sm:$0xf]
  %v256 = vld [vmem:[%s5 + $0x10] sm:$0xf]
  %v257 = vld [vmem:[%s5 + $0x14] sm:$0xf]
  %v258 = vld [vmem:[%s5 + $0x18] sm:$0xf]
  %v259 = vld [vmem:[%s5 + $0x1c] sm:$0xf]
  %v260 = vld [vmem:[%s5 + $0x20] sm:$0xf]
  %v261 = vld [vmem:[%s5 + $0x24] sm:$0xf]
  %v262 = vld [vmem:[%s5 + $0x28] sm:$0xf]
  %v263 = vld [vmem:[%s5 + $0x2c] sm:$0xf]
  %v264 = vld [vmem:[%s5 + $0x30] sm:$0xf]
  %v265 = vld [vmem:[%s5 + $0x34] sm:$0xf]
  %v266 = vld [vmem:[%s5 + $0x38] sm:$0xf]
  %v267 = vld [vmem:[%s5 + $0x3c] sm:$0xf]
  %v268 = vld [vmem:[%s6] sm:$0x1]
  %v270 = vlaneseq
  %v271 = vshrl.u32 %v270, 7
  %v272 = vsub.s32 0, %v271
  %v273 = vrot.slane %v268, %v272
  %v291 = vunpack.c.l.b16 %v252
  %v292 = vunpack.c.l.b16 %v253
  %v293 = vunpack.c.l.b16 %v254
  %v294 = vunpack.c.l.b16 %v255
  %v295 = vunpack.c.l.b16 %v256
  %v296 = vunpack.c.l.b16 %v257
  %v297 = vunpack.c.l.b16 %v258
  %v298 = vunpack.c.l.b16 %v259
  %v299 = vunpack.c.l.b16 %v260
  %v300 = vunpack.c.l.b16 %v261
  %v301 = vunpack.c.l.b16 %v262
  %v302 = vunpack.c.l.b16 %v263
  %v303 = vunpack.c.l.b16 %v264
  %v304 = vunpack.c.l.b16 %v265
  %v305 = vunpack.c.l.b16 %v266
  %v306 = vunpack.c.l.b16 %v267
  %v307 = vpack.c.b16 %v292, %v291
  %v308 = vpack.c.b16 %v294, %v293
  %v309 = vpack.c.b16 %v296, %v295
  %v310 = vpack.c.b16 %v298, %v297
  %v311 = vpack.c.b16 %v300, %v299
  %v312 = vpack.c.b16 %v302, %v301
  %v313 = vpack.c.b16 %v304, %v303
  %v314 = vpack.c.b16 %v306, %v305
  %323 = vmatprep.subr.bf16.mxu0 0
  %324 = vmatpush1.bf16.msra.mxu0 %v307
  %325 = vmatprep.subr.bf16.mxu0 0
  %326 = vmatpush1.bf16.msra.mxu0 %v308
  %327 = vmatprep.subr.bf16.mxu0 0
  %328 = vmatpush1.bf16.msra.mxu0 %v309
  %329 = vmatprep.subr.bf16.mxu0 0
  %330 = vmatpush1.bf16.msra.mxu0 %v310
  %331 = vmatprep.subr.bf16.mxu0 0
  %332 = vmatpush1.bf16.msra.mxu0 %v311
  %333 = vmatprep.subr.bf16.mxu0 0
  %334 = vmatpush1.bf16.msra.mxu0 %v312
  %335 = vmatprep.subr.bf16.mxu0 0
  %336 = vmatpush1.bf16.msra.mxu0 %v313
  %337 = vmatprep.subr.bf16.mxu0 0
  %338 = vmatpush1.bf16.msra.mxu0 %v314
  %339 = vmatprep.subr.bf16.mxu0 0
  %340 = vmatpush1.bf16.msra.mxu0 0
  %341 = vmatprep.subr.bf16.mxu0 0
  %342 = vmatpush1.bf16.msra.mxu0 0
  %343 = vmatprep.subr.bf16.mxu0 0
  %344 = vmatpush1.bf16.msra.mxu0 0
  %345 = vmatprep.subr.bf16.mxu0 0
  %346 = vmatpush1.bf16.msra.mxu0 0
  %347 = vmatprep.subr.bf16.mxu0 0
  %348 = vmatpush1.bf16.msra.mxu0 0
  %349 = vmatprep.subr.bf16.mxu0 0
  %350 = vmatpush1.bf16.msra.mxu0 0
  %351 = vmatprep.subr.bf16.mxu0 0
  %352 = vmatpush1.bf16.msra.mxu0 0
  %353 = vmatprep.subr.bf16.mxu0 0
  %354 = vmatpush1.bf16.msra.mxu0 0
  %355 = vmatprep.mubr.bf16.mxu0 0
  %356 = vmatmul.mubr.bf16.gmra.mrb[0].mxu0 %v251
  %v357 = vpop.f32.mrb[0].mxu0
  %v358 = vadd.f32 %v273, %v357
  %v359 = vpop.f32.mrb[0].mxu0
  %v360 = vpop.f32.mrb[0].mxu0
  %v361 = vpop.f32.mrb[0].mxu0
  %362 = vdwg.mxu0
  %363 = vst [vmem:[%s7] sm:$0xff] %v358
  // Predicated region
  $region30: #{diverse_ensemble_forward.1} parent=0 // pred_check
    _
  $region31: #{diverse_ensemble_forward.1} parent=0 // pred_check_branch
    %365 = sbr.rel (0) target = $region33
  $region32: #{diverse_ensemble_forward.1} parent=0 // pred_region
    _
  $region33: #{diverse_ensemble_forward.1} parent=0 // pred_fallthru
    _
  // Predicated region
  $region34: #{diverse_ensemble_forward.1} parent=0 // pred_check
    _
  $region35: #{diverse_ensemble_forward.1} parent=0 // pred_check_branch
    %367 = sbr.rel (0) target = $region37
  $region36: #{diverse_ensemble_forward.1} parent=0 // pred_region
    _
  $region37: #{diverse_ensemble_forward.1} parent=0 // pred_fallthru
    _

</llo_original>
